<compile_context>
chip_gen: v5e
topology: v5e:2x2
jax: 0.10.0
libtpu: 0.0.40
codegen_flags: <defaults>
</compile_context>

<pallas_src>
import jax
import jax.numpy as jnp
from jax.experimental import pallas as pl
from jax.experimental.pallas import tpu as pltpu

MAX_LEN = 16      # module max_len
HIDDEN = 32       # module hidden_dim
BATCH = 2         # batch of the (shape-only) input x
SEQ = 8           # x.size(1) -> number of positions actually emitted


def pos_emb_copy_kernel(table_ref, out_ref):
    # table_ref: (row_tile, hidden) -- rows [i*row_tile, (i+1)*row_tile) of the
    #            embedding table, selected by the BlockSpec (positions ARE row ids).
    # out_ref:   (row_tile, hidden)
    out_ref[...] = table_ref[...]


@jax.jit
def positional_embedding_forward(x, emb_weight):
    # Only x.shape[1] matters, exactly as in the PyTorch forward.
    seq_len = x.shape[1]
    max_len, hidden = emb_weight.shape
    if seq_len > max_len:
        # nn.Embedding would raise on out-of-range indices; fail loudly, not silently.
        raise ValueError(f"seq_len={seq_len} exceeds max_len={max_len}")

    # Row tile: keep the sublane dim a multiple of 8 when possible so the block
    # is tile-aligned; otherwise fall back to a single full-output block.
    if seq_len % 8 == 0:
        row_tile = min(seq_len, 512)
        while seq_len % row_tile != 0:
            row_tile //= 2
        grid = (seq_len // row_tile,)
    else:
        row_tile = seq_len
        grid = (1,)

    out2d = pl.pallas_call(
        pos_emb_copy_kernel,
        out_shape=jax.ShapeDtypeStruct((seq_len, hidden), emb_weight.dtype),
        grid=grid,
        # BlockSpec-level slice: only the first seq_len rows of the table are DMA'd.
        in_specs=[pl.BlockSpec((row_tile, hidden), lambda i: (i, 0))],
        out_specs=pl.BlockSpec((row_tile, hidden), lambda i: (i, 0)),
        compiler_params=pltpu.CompilerParams(
            dimension_semantics=("parallel",)),
    )(emb_weight)

    # Free reshape outside the kernel restores the PyTorch (1, seq, hidden) shape.
    return out2d[None]


if __name__ == "__main__":
    key = jax.random.PRNGKey(0)
    kx, kw = jax.random.split(key)
    # x: (batch, seq, hidden) -- only its seq dimension is used by the module.
    x = jax.random.normal(kx, (BATCH, SEQ, HIDDEN), jnp.float32)
    # nn.Embedding default init: N(0, 1)
    emb_weight = jax.random.normal(kw, (MAX_LEN, HIDDEN), jnp.float32)

    out = positional_embedding_forward(x, emb_weight)
    jax.block_until_ready(out)

    # pure-JAX reference: embedding of arange positions, sliced to x.size(1)
    ref = emb_weight[:SEQ][None]
    assert out.shape == (1, SEQ, HIDDEN), out.shape
    # Pure copy -> bit-exact.
    assert jnp.array_equal(out, ref), float(jnp.max(jnp.abs(out - ref)))

    print("KERNEL_OK")
</pallas_src>

<mosaic_0001>
module attributes {stable_mosaic.version = 11 : i64} {
  func.func @pos_emb_copy_kernel(%arg0: i32, %arg1: memref<8x32xf32, #tpu.memory_space<vmem>>, %arg2: memref<8x32xf32, #tpu.memory_space<vmem>>) attributes {dimension_semantics = [#tpu.dimension_semantics<parallel>], iteration_bounds = array<i64: 1>, scalar_prefetch = 0 : i64, scratch_operands = 0 : i64, tpu.core_type = #tpu.core_type<tc>, window_params = [{transform_indices = @transform_0, window_bounds = array<i64: 8, 32>}, {transform_indices = @transform_1, window_bounds = array<i64: 8, 32>}]} {
    %c0 = arith.constant 0 : index
    %c0_0 = arith.constant 0 : index
    %0 = vector.load %arg1[%c0, %c0_0] : memref<8x32xf32, #tpu.memory_space<vmem>>, vector<8x32xf32>
    %c0_1 = arith.constant 0 : index
    %c0_2 = arith.constant 0 : index
    %1 = vector.load %arg2[%c0_1, %c0_2] : memref<8x32xf32, #tpu.memory_space<vmem>>, vector<8x32xf32>
    tpu.vector_store %arg2[%c0_1, %c0_2], %0 {strides = array<i32>} : memref<8x32xf32, #tpu.memory_space<vmem>>, vector<8x32xf32>,
    return
  }
  func.func @transform_0(%arg0: i32) -> (i32, i32) {
    %c0_i32 = arith.constant 0 : i32
    %c0_i32_0 = arith.constant 0 : i32
    return %arg0, %c0_i32 : i32, i32
  }
  func.func @transform_1(%arg0: i32) -> (i32, i32) {
    %c0_i32 = arith.constant 0 : i32
    %c0_i32_0 = arith.constant 0 : i32
    return %arg0, %c0_i32 : i32, i32
  }
}

</mosaic_0001>

<llo_original>
// kernel: positional_embedding_forward.1
$region0: #{positional_embedding_forward.1}
  #allocation0 [shape = 'u32[]', space=smem, size = 0x4, offset = 0x4, fixed_abs, tag = 'smem constant byte address 0x4 - core index']
  #allocation1 [shape = 'u32[72,128]{1,0:T(1,128)}', space=vmem, size = 0x9000, scoped, tag = 'internal scratch']
  %s0 = inlined_call_operand.hbm [shape: f32[16,32], index: 0, kind: input, shape index: {}]
  %s1 = inlined_call_operand.hbm [shape: f32[8,32], index: 1, kind: output, shape index: {}]
  %s2 = sld [smem:[#allocation0]]
  $region18: #{positional_embedding_forward.1} parent=0
    _
  %s4 = ssub.s32 1, %s2
  %s5 = scalar_select 0, %s4, %s2
  $region1: #{positional_embedding_forward.1} parent=0
    #allocation2 [shape = 'u8[4096]{0}', space=vmem, size = 0x1000, scoped, tag = 'input window, operand 0, single buffered']
    #allocation3 [shape = 's32[1]{0}', space=sflag, size = 0x4, scoped, tag = 'scoped memory for positional_embedding_forward.1']
    #allocation4 [shape = 's32[1]{0}', space=sflag, size = 0x4, scoped, tag = 'scoped memory for positional_embedding_forward.1']
    #allocation5 [shape = 'u8[4096]{0}', space=vmem, size = 0x1000, scoped, tag = 'output window, operand 0, single buffered']
    %6 = vsyncpa [#allocation3], 0
    %7 = vsyncpa [#allocation4], 0
    // Predicated region
    $region2: #{positional_embedding_forward.1} parent=1 // pred_check
      _
    $region3: #{positional_embedding_forward.1} parent=1 // pred_check_branch
      %9 = sbr.rel (0) target = $region5
    $region4: #{positional_embedding_forward.1} parent=1 // pred_region
      %11 = vsyncadd [#allocation3], 0
      %s13 = sshll.u32 %s0, 4
      %s14 = int_to_ptr.hbm [resolvable:$true] %s13
      %s15 = sshll.u32 [#allocation2], 4
      %s16 = int_to_ptr.vmem [resolvable:$true] %s15
      %18 = dma.hbm_to_vmem [thread:$0]  %s14, 128, %s16, [#allocation3]
    $region5: #{positional_embedding_forward.1} parent=1 // pred_fallthru
      _
    // Predicated region
    $region6: #{positional_embedding_forward.1} parent=1 // pred_check
      _
    $region7: #{positional_embedding_forward.1} parent=1 // pred_check_branch
      %20 = sbr.rel (0) target = $region9
    $region8: #{positional_embedding_forward.1} parent=1 // pred_region
      %22 = dma.done [#allocation3], 128
    $region9: #{positional_embedding_forward.1} parent=1 // pred_fallthru
      _
    %v23 = vld [vmem:[#allocation2] sm:$0xff]
    %vm24 = vcmask 261120
    %25 = vst.msk [vmem:[#allocation5] sm:$0xff] %vm24, %v23
    // Predicated region
    $region10: #{positional_embedding_forward.1} parent=1 // pred_check
      _
    $region11: #{positional_embedding_forward.1} parent=1 // pred_check_branch
      %27 = sbr.rel (0) target = $region13
    $region12: #{positional_embedding_forward.1} parent=1 // pred_region
      %29 = vsyncadd [#allocation4], 0
      %s31 = sshll.u32 [#allocation5], 4
      %s32 = int_to_ptr.vmem [resolvable:$true] %s31
      %s33 = sshll.u32 %s1, 4
      %s34 = int_to_ptr.hbm [resolvable:$true] %s33
      %36 = dma.vmem_to_hbm [thread:$0]  %s32, 128, %s34, [#allocation4]
    $region13: #{positional_embedding_forward.1} parent=1 // pred_fallthru
      _
    // Predicated region
    $region14: #{positional_embedding_forward.1} parent=1 // pred_check
      _
    $region15: #{positional_embedding_forward.1} parent=1 // pred_check_branch
      %38 = sbr.rel (0) target = $region17
    $region16: #{positional_embedding_forward.1} parent=1 // pred_region
      %40 = dma.done [#allocation4], 128
    $region17: #{positional_embedding_forward.1} parent=1 // pred_fallthru
      _
    %41 = vsyncpa [#allocation3], 1
    %42 = vsyncpa [#allocation4], 1

</llo_original>
